<compile_context>
chip_gen: v6e
topology: v6e:2x2x1
jax: 0.10.0
libtpu: 0.0.40
codegen_flags: <defaults>
</compile_context>

<pallas_src>
import functools

import jax
import jax.numpy as jnp
from jax.experimental import pallas as pl
from jax.experimental.pallas import tpu as pltpu

LANE = 128            # lane quantum (last dim)
SUBLANE = 8           # sublane quantum (second-to-last dim, f32)
_SINGLE_BLOCK_M = 128  # batches up to this use one full-extent M block (no pad/slice)
_TM_CAP = 512          # max rows per M block for large batches


def _round_up(x, m):
    return ((x + m - 1) // m) * m


def linear_kernel(x_ref, w_ref, o_ref):
    x = x_ref[...]
    w = w_ref[...]
    if x.dtype != w.dtype:
        # e.g. f32 activations against bf16 weights: cast on-chip (VPU), so the
        # halved weight bytes are the only HBM-traffic change.
        x = x.astype(w.dtype)
    o_ref[...] = jnp.dot(x, w, preferred_element_type=jnp.float32).astype(o_ref.dtype)


def prepare_query_weight(weight, dtype=None):
    """One-time prep of the PyTorch weight (hidden_dim, bert_dim).

    Returns (w_t, hidden_dim). w_t has shape (bert_dim, N_pad) with N_pad a
    multiple of 128 (lane-dense, unmasked output stores); extra columns are
    zero. Optionally casts to `dtype` (e.g. jnp.bfloat16) to halve streamed
    weight bytes on this HBM-bound kernel.
    """
    w_t = jnp.asarray(weight).T  # (K, N)
    if dtype is not None:
        w_t = w_t.astype(dtype)
    _, n = w_t.shape
    n_pad = max(LANE, _round_up(n, LANE))
    if n_pad != n:
        w_t = jnp.pad(w_t, ((0, 0), (0, n_pad - n)))
    return w_t, n


@functools.partial(jax.jit, static_argnames=("tm", "m_pad"))
def _query_matmul(x, w_t, *, tm, m_pad):
    M, K = x.shape
    N = w_t.shape[1]

    if m_pad != M:
        x = jnp.pad(x, ((0, m_pad - M), (0, 0)))

    grid = (m_pad // tm,)

    return pl.pallas_call(
        linear_kernel,
        out_shape=jax.ShapeDtypeStruct((m_pad, N), x.dtype),
        grid_spec=pltpu.PrefetchScalarGridSpec(
            num_scalar_prefetch=0,
            grid=grid,
            in_specs=[
                # x: one block of rows per grid step, full K (un-tiled reduction).
                pl.BlockSpec((tm, K), lambda i: (i, 0)),
                # W: full-extent block, constant index_map -> fetched once and
                # kept resident in VMEM across all M blocks.
                pl.BlockSpec((K, N), lambda i: (0, 0)),
            ],
            out_specs=pl.BlockSpec((tm, N), lambda i: (i, 0)),
        ),
        compiler_params=pltpu.CompilerParams(
            # M axis "parallel": >= 2 M blocks shard across v7x's two TensorCores.
            dimension_semantics=("parallel",),
        ),
        cost_estimate=pl.CostEstimate(
            flops=2 * m_pad * N * K,
            bytes_accessed=(
                x.dtype.itemsize * m_pad * K      # activations, read once
                + w_t.dtype.itemsize * K * N      # weight, read once (resident)
                + x.dtype.itemsize * m_pad * N    # output, written once
            ),
            transcendentals=0,
        ),
    )(x, w_t)


def query_model_forward(x, w_t, hidden_dim=None):
    """x: (M, bert_dim); w_t: (bert_dim, N_pad) from prepare_query_weight."""
    M, _ = x.shape
    n_pad = w_t.shape[1]
    if hidden_dim is None:
        hidden_dim = n_pad

    if M <= _SINGLE_BLOCK_M:
        # Single full-extent M block: no padding, no output slice, grid = (1,).
        tm, m_pad = M, M
    else:
        # Pad at sublane (8-row) granularity, then split into >= 2 blocks so
        # both v7x TensorCores get work; cap tm at 512 for v6e/v7x roofline.
        m8 = _round_up(M, SUBLANE)
        nblocks = max(2, pl.cdiv(m8, _TM_CAP))
        tm = _round_up(pl.cdiv(m8, nblocks), SUBLANE)
        m_pad = nblocks * tm

    y = _query_matmul(x, w_t, tm=tm, m_pad=m_pad)

    if m_pad != M:
        y = y[:M]
    if hidden_dim != n_pad:
        y = y[:, :hidden_dim]
    return y


if __name__ == "__main__":
    # Shapes consistent with the module: bert_dim=768 (default), hidden_dim=128.
    batch = 8
    bert_dim = 768
    hidden_dim = 128

    key = jax.random.PRNGKey(0)
    kx, kw = jax.random.split(key)
    x = jax.random.normal(kx, (batch, bert_dim), dtype=jnp.float32)
    # Deterministic init mimicking nn.Linear's uniform(-1/sqrt(fan_in), 1/sqrt(fan_in)).
    bound = 1.0 / jnp.sqrt(jnp.float32(bert_dim))
    weight = jax.random.uniform(
        kw, (hidden_dim, bert_dim), dtype=jnp.float32, minval=-bound, maxval=bound
    )

    # --- f32 path (exact module semantics), single-block fast path (no pad/slice).
    w_t, n_out = prepare_query_weight(weight)
    y = query_model_forward(x, w_t, n_out)
    jax.block_until_ready(y)
    y_ref = x @ weight.T
    assert y.shape == (batch, hidden_dim)
    assert jnp.allclose(y, y_ref, atol=1e-4, rtol=1e-4)

    # --- Non-multiple-of-8 batch: still a single full-extent block, no padding.
    x2 = jax.random.normal(jax.random.PRNGKey(1), (5, bert_dim), dtype=jnp.float32)
    y2 = query_model_forward(x2, w_t, n_out)
    jax.block_until_ready(y2)
    assert y2.shape == (5, hidden_dim)
    assert jnp.allclose(y2, x2 @ weight.T, atol=1e-4, rtol=1e-4)

    # --- Larger batch exercising the multi-block (>=2 M tiles, 8-row-padded) path.
    x3 = jax.random.normal(jax.random.PRNGKey(2), (200, bert_dim), dtype=jnp.float32)
    y3 = query_model_forward(x3, w_t, n_out)
    jax.block_until_ready(y3)
    assert y3.shape == (200, hidden_dim)
    assert jnp.allclose(y3, x3 @ weight.T, atol=1e-4, rtol=1e-4)

    # --- hidden_dim not a multiple of 128: weight padded to lane-dense N once at init.
    weight_96 = weight[:96]
    w_t96, n96 = prepare_query_weight(weight_96)
    y5 = query_model_forward(x, w_t96, n96)
    jax.block_until_ready(y5)
    assert y5.shape == (batch, 96)
    assert jnp.allclose(y5, x @ weight_96.T, atol=1e-4, rtol=1e-4)

    # --- Optional bf16-weight path (halves dominant streamed bytes; looser tolerance).
    w_bf16, n_bf = prepare_query_weight(weight, dtype=jnp.bfloat16)
    y4 = query_model_forward(x, w_bf16, n_bf)
    jax.block_until_ready(y4)
    assert y4.shape == (batch, hidden_dim)
    assert jnp.allclose(y4, y_ref, atol=2e-2, rtol=2e-2)

    # TODO(synk): fp8(e4m3) weight + per-output-channel scale for v7x is possible
    # (fp8-native MXU) but needs dedicated numerics validation; not enabled here.

    print("KERNEL_OK")
</pallas_src>

<mosaic_0001>
module attributes {stable_mosaic.version = 11 : i64} {
  func.func @linear_kernel(%arg0: i32, %arg1: memref<8x768xf32, #tpu.memory_space<vmem>>, %arg2: memref<768x128xf32, #tpu.memory_space<vmem>>, %arg3: memref<8x128xf32, #tpu.memory_space<vmem>>) attributes {dimension_semantics = [#tpu.dimension_semantics<parallel>], iteration_bounds = array<i64: 1>, scalar_prefetch = 0 : i64, scratch_operands = 0 : i64, tpu.core_type = #tpu.core_type<tc>, window_params = [{transform_indices = @transform_0, window_bounds = array<i64: 8, 768>}, {pipeline_mode = #tpu.pipeline_mode<synchronous>, transform_indices = @transform_1, window_bounds = array<i64: 768, 128>}, {transform_indices = @transform_2, window_bounds = array<i64: 8, 128>}]} {
    %c0 = arith.constant 0 : index
    %c0_0 = arith.constant 0 : index
    %0 = vector.load %arg1[%c0, %c0_0] : memref<8x768xf32, #tpu.memory_space<vmem>>, vector<8x768xf32>
    %c0_1 = arith.constant 0 : index
    %c0_2 = arith.constant 0 : index
    %1 = vector.load %arg2[%c0_1, %c0_2] : memref<768x128xf32, #tpu.memory_space<vmem>>, vector<768x128xf32>
    %cst = arith.constant dense<0.000000e+00> : vector<8x128xf32>
    %2 = tpu.matmul %0, %1, %cst {dimension_numbers = #tpu.dot_dimension_numbers<[1], [0], [0], [1], [0, 0, 1, 1], [], []>} : vector<8x768xf32>, vector<768x128xf32>, vector<8x128xf32> -> vector<8x128xf32>
    %c0_3 = arith.constant 0 : index
    %c0_4 = arith.constant 0 : index
    %3 = vector.load %arg3[%c0_3, %c0_4] : memref<8x128xf32, #tpu.memory_space<vmem>>, vector<8x128xf32>
    tpu.vector_store %arg3[%c0_3, %c0_4], %2 {strides = array<i32>} : memref<8x128xf32, #tpu.memory_space<vmem>>, vector<8x128xf32>,
    return
  }
  func.func @transform_0(%arg0: i32) -> (i32, i32) {
    %c0_i32 = arith.constant 0 : i32
    %c0_i32_0 = arith.constant 0 : i32
    return %arg0, %c0_i32 : i32, i32
  }
  func.func @transform_1(%arg0: i32) -> (i32, i32) {
    %c0_i32 = arith.constant 0 : i32
    %c0_i32_0 = arith.constant 0 : i32
    %c0_i32_1 = arith.constant 0 : i32
    return %c0_i32, %c0_i32_0 : i32, i32
  }
  func.func @transform_2(%arg0: i32) -> (i32, i32) {
    %c0_i32 = arith.constant 0 : i32
    %c0_i32_0 = arith.constant 0 : i32
    return %arg0, %c0_i32 : i32, i32
  }
}

</mosaic_0001>

<llo_original>
// kernel: _query_matmul.1
$region0: #{_query_matmul.1}
  #allocation0 [shape = 'u32[]', space=smem, size = 0x4, offset = 0x4, fixed_abs, tag = 'smem constant byte address 0x4 - core index']
  #allocation1 [shape = 'u32[144,128]{1,0:T(1,128)}', space=vmem, size = 0x12000, scoped, tag = 'internal scratch']
  %s0 = inlined_call_operand.hbm [shape: f32[8,768], index: 0, kind: input, shape index: {}]
  %s1 = inlined_call_operand.hbm [shape: f32[768,128], index: 1, kind: input, shape index: {}]
  %s2 = inlined_call_operand.hbm [shape: f32[8,128], index: 2, kind: output, shape index: {}]
  %s3 = sld [smem:[#allocation0]]
  $region26: #{_query_matmul.1} parent=0
    _
  %s5 = ssub.s32 1, %s3
  %s6 = scalar_select 0, %s5, %s3
  $region1: #{_query_matmul.1} parent=0
    #allocation2 [shape = 'u8[24576]{0}', space=vmem, size = 0x6000, scoped, tag = 'input window, operand 0, single buffered']
    #allocation3 [shape = 's32[1]{0}', space=sflag, size = 0x4, scoped, tag = 'scoped memory for _query_matmul.1']
    #allocation4 [shape = 's32[1]{0}', space=sflag, size = 0x4, scoped, tag = 'scoped memory for _query_matmul.1']
    #allocation5 [shape = 'u8[393216]{0}', space=vmem, size = 0x60000, scoped, tag = 'input window, operand 1, single buffered']
    #allocation6 [shape = 's32[1]{0}', space=sflag, size = 0x4, scoped, tag = 'scoped memory for _query_matmul.1']
    #allocation7 [shape = 'u8[4096]{0}', space=vmem, size = 0x1000, scoped, tag = 'output window, operand 0, single buffered']
    %7 = vsyncpa [#allocation3], 0
    %8 = vsyncpa [#allocation6], 0
    %9 = vsyncpa [#allocation4], 0
    // Predicated region
    $region2: #{_query_matmul.1} parent=1 // pred_check
      _
    $region3: #{_query_matmul.1} parent=1 // pred_check_branch
      %11 = sbr.rel (0) target = $region5
    $region4: #{_query_matmul.1} parent=1 // pred_region
      %s13 = ssub.s32 768, 768
      %14 = vsyncadd [#allocation3], %s13
      %s16 = sshll.u32 [#allocation2], 4
      %s17 = int_to_ptr.vmem [resolvable:$true] %s16
      %19 = dma.hbm_to_vmem [thread:$0]  %s0, 768, %s17, [#allocation3]
    $region5: #{_query_matmul.1} parent=1 // pred_fallthru
      _
    // Predicated region
    $region6: #{_query_matmul.1} parent=1 // pred_check
      _
    $region7: #{_query_matmul.1} parent=1 // pred_check_branch
      %21 = sbr.rel (0) target = $region9
    $region8: #{_query_matmul.1} parent=1 // pred_region
      %s23 = ssub.s32 12288, 12288
      %24 = vsyncadd [#allocation6], %s23
      %s25 = sshll.u32 [#allocation5], 4
      %s26 = int_to_ptr.vmem [resolvable:$true] %s25
      %31 = dma.hbm_to_vmem [thread:$0]  %s1, 12288, %s26, [#allocation6], 128, 128, 8
    $region9: #{_query_matmul.1} parent=1 // pred_fallthru
      _
    // Predicated region
    $region10: #{_query_matmul.1} parent=1 // pred_check
      _
    $region11: #{_query_matmul.1} parent=1 // pred_check_branch
      %33 = sbr.rel (0) target = $region13
    $region12: #{_query_matmul.1} parent=1 // pred_region
      %34 = dma.done [#allocation3], 768
    $region13: #{_query_matmul.1} parent=1 // pred_fallthru
      _
    // Predicated region
    $region14: #{_query_matmul.1} parent=1 // pred_check
      _
    $region15: #{_query_matmul.1} parent=1 // pred_check_branch
      %36 = sbr.rel (0) target = $region17
    $region16: #{_query_matmul.1} parent=1 // pred_region
      %37 = dma.done [#allocation6], 12288
    $region17: #{_query_matmul.1} parent=1 // pred_fallthru
      _
    %v38 = vld [vmem:[#allocation2] sm:$0xff]
    %v39 = vld [vmem:[#allocation2 + $0x8] sm:$0xff]
    %v40 = vld [vmem:[#allocation2 + $0x10] sm:$0xff]
    %v41 = vld [vmem:[#allocation2 + $0x18] sm:$0xff]
    %v42 = vld [vmem:[#allocation2 + $0x20] sm:$0xff]
    %v43 = vld [vmem:[#allocation2 + $0x28] sm:$0xff]
    %v44 = vld [vmem:[#allocation5] sm:$0xff]
    %v45 = vld [vmem:[#allocation5 + $0x8] sm:$0xff]
    %v46 = vld [vmem:[#allocation5 + $0x10] sm:$0xff]
    %v47 = vld [vmem:[#allocation5 + $0x18] sm:$0xff]
    %v48 = vld [vmem:[#allocation5 + $0x20] sm:$0xff]
    %v49 = vld [vmem:[#allocation5 + $0x28] sm:$0xff]
    %v50 = vld [vmem:[#allocation5 + $0x30] sm:$0xff]
    %v51 = vld [vmem:[#allocation5 + $0x38] sm:$0xff]
    %v52 = vld [vmem:[#allocation5 + $0x40] sm:$0xff]
    %v53 = vld [vmem:[#allocation5 + $0x48] sm:$0xff]
    %v54 = vld [vmem:[#allocation5 + $0x50] sm:$0xff]
    %v55 = vld [vmem:[#allocation5 + $0x58] sm:$0xff]
    %v56 = vld [vmem:[#allocation5 + $0x60] sm:$0xff]
    %v57 = vld [vmem:[#allocation5 + $0x68] sm:$0xff]
    %v58 = vld [vmem:[#allocation5 + $0x70] sm:$0xff]
    %v59 = vld [vmem:[#allocation5 + $0x78] sm:$0xff]
    %v60 = vld [vmem:[#allocation5 + $0x80] sm:$0xff]
    %v61 = vld [vmem:[#allocation5 + $0x88] sm:$0xff]
    %v62 = vld [vmem:[#allocation5 + $0x90] sm:$0xff]
    %v63 = vld [vmem:[#allocation5 + $0x98] sm:$0xff]
    %v64 = vld [vmem:[#allocation5 + $0xa0] sm:$0xff]
    %v65 = vld [vmem:[#allocation5 + $0xa8] sm:$0xff]
    %v66 = vld [vmem:[#allocation5 + $0xb0] sm:$0xff]
    %v67 = vld [vmem:[#allocation5 + $0xb8] sm:$0xff]
    %v68 = vld [vmem:[#allocation5 + $0xc0] sm:$0xff]
    %v69 = vld [vmem:[#allocation5 + $0xc8] sm:$0xff]
    %v70 = vld [vmem:[#allocation5 + $0xd0] sm:$0xff]
    %v71 = vld [vmem:[#allocation5 + $0xd8] sm:$0xff]
    %v72 = vld [vmem:[#allocation5 + $0xe0] sm:$0xff]
    %v73 = vld [vmem:[#allocation5 + $0xe8] sm:$0xff]
    %v74 = vld [vmem:[#allocation5 + $0xf0] sm:$0xff]
    %v75 = vld [vmem:[#allocation5 + $0xf8] sm:$0xff]
    %v76 = vld [vmem:[#allocation5 + $0x100] sm:$0xff]
    %v77 = vld [vmem:[#allocation5 + $0x108] sm:$0xff]
    %v78 = vld [vmem:[#allocation5 + $0x110] sm:$0xff]
    %v79 = vld [vmem:[#allocation5 + $0x118] sm:$0xff]
    %v80 = vld [vmem:[#allocation5 + $0x120] sm:$0xff]
    %v81 = vld [vmem:[#allocation5 + $0x128] sm:$0xff]
    %v82 = vld [vmem:[#allocation5 + $0x130] sm:$0xff]
    %v83 = vld [vmem:[#allocation5 + $0x138] sm:$0xff]
    %v84 = vld [vmem:[#allocation5 + $0x140] sm:$0xff]
    %v85 = vld [vmem:[#allocation5 + $0x148] sm:$0xff]
    %v86 = vld [vmem:[#allocation5 + $0x150] sm:$0xff]
    %v87 = vld [vmem:[#allocation5 + $0x158] sm:$0xff]
    %v88 = vld [vmem:[#allocation5 + $0x160] sm:$0xff]
    %v89 = vld [vmem:[#allocation5 + $0x168] sm:$0xff]
    %v90 = vld [vmem:[#allocation5 + $0x170] sm:$0xff]
    %v91 = vld [vmem:[#allocation5 + $0x178] sm:$0xff]
    %v92 = vld [vmem:[#allocation5 + $0x180] sm:$0xff]
    %v93 = vld [vmem:[#allocation5 + $0x188] sm:$0xff]
    %v94 = vld [vmem:[#allocation5 + $0x190] sm:$0xff]
    %v95 = vld [vmem:[#allocation5 + $0x198] sm:$0xff]
    %v96 = vld [vmem:[#allocation5 + $0x1a0] sm:$0xff]
    %v97 = vld [vmem:[#allocation5 + $0x1a8] sm:$0xff]
    %v98 = vld [vmem:[#allocation5 + $0x1b0] sm:$0xff]
    %v99 = vld [vmem:[#allocation5 + $0x1b8] sm:$0xff]
    %v100 = vld [vmem:[#allocation5 + $0x1c0] sm:$0xff]
    %v101 = vld [vmem:[#allocation5 + $0x1c8] sm:$0xff]
    %v102 = vld [vmem:[#allocation5 + $0x1d0] sm:$0xff]
    %v103 = vld [vmem:[#allocation5 + $0x1d8] sm:$0xff]
    %v104 = vld [vmem:[#allocation5 + $0x1e0] sm:$0xff]
    %v105 = vld [vmem:[#allocation5 + $0x1e8] sm:$0xff]
    %v106 = vld [vmem:[#allocation5 + $0x1f0] sm:$0xff]
    %v107 = vld [vmem:[#allocation5 + $0x1f8] sm:$0xff]
    %v108 = vld [vmem:[#allocation5 + $0x200] sm:$0xff]
    %v109 = vld [vmem:[#allocation5 + $0x208] sm:$0xff]
    %v110 = vld [vmem:[#allocation5 + $0x210] sm:$0xff]
    %v111 = vld [vmem:[#allocation5 + $0x218] sm:$0xff]
    %v112 = vld [vmem:[#allocation5 + $0x220] sm:$0xff]
    %v113 = vld [vmem:[#allocation5 + $0x228] sm:$0xff]
    %v114 = vld [vmem:[#allocation5 + $0x230] sm:$0xff]
    %v115 = vld [vmem:[#allocation5 + $0x238] sm:$0xff]
    %v116 = vld [vmem:[#allocation5 + $0x240] sm:$0xff]
    %v117 = vld [vmem:[#allocation5 + $0x248] sm:$0xff]
    %v118 = vld [vmem:[#allocation5 + $0x250] sm:$0xff]
    %v119 = vld [vmem:[#allocation5 + $0x258] sm:$0xff]
    %v120 = vld [vmem:[#allocation5 + $0x260] sm:$0xff]
    %v121 = vld [vmem:[#allocation5 + $0x268] sm:$0xff]
    %v122 = vld [vmem:[#allocation5 + $0x270] sm:$0xff]
    %v123 = vld [vmem:[#allocation5 + $0x278] sm:$0xff]
    %v124 = vld [vmem:[#allocation5 + $0x280] sm:$0xff]
    %v125 = vld [vmem:[#allocation5 + $0x288] sm:$0xff]
    %v126 = vld [vmem:[#allocation5 + $0x290] sm:$0xff]
    %v127 = vld [vmem:[#allocation5 + $0x298] sm:$0xff]
    %v128 = vld [vmem:[#allocation5 + $0x2a0] sm:$0xff]
    %v129 = vld [vmem:[#allocation5 + $0x2a8] sm:$0xff]
    %v130 = vld [vmem:[#allocation5 + $0x2b0] sm:$0xff]
    %v131 = vld [vmem:[#allocation5 + $0x2b8] sm:$0xff]
    %v132 = vld [vmem:[#allocation5 + $0x2c0] sm:$0xff]
    %v133 = vld [vmem:[#allocation5 + $0x2c8] sm:$0xff]
    %v134 = vld [vmem:[#allocation5 + $0x2d0] sm:$0xff]
    %v135 = vld [vmem:[#allocation5 + $0x2d8] sm:$0xff]
    %v136 = vld [vmem:[#allocation5 + $0x2e0] sm:$0xff]
    %v137 = vld [vmem:[#allocation5 + $0x2e8] sm:$0xff]
    %v138 = vld [vmem:[#allocation5 + $0x2f0] sm:$0xff]
    %v139 = vld [vmem:[#allocation5 + $0x2f8] sm:$0xff]
    %140 = vmatprep.subr.mxu0 0.0
    %141 = vmatpush1.msra.mxu0 %v59
    %142 = vmatprep.subr.mxu0 0.0
    %143 = vmatpush1.msra.mxu0 %v58
    %144 = vmatprep.subr.mxu0 0.0
    %145 = vmatpush1.msra.mxu0 %v57
    %146 = vmatprep.subr.mxu0 0.0
    %147 = vmatpush1.msra.mxu0 %v56
    %148 = vmatprep.subr.mxu0 0.0
    %149 = vmatpush1.msra.mxu0 %v55
    %150 = vmatprep.subr.mxu0 0.0
    %151 = vmatpush1.msra.mxu0 %v54
    %152 = vmatprep.subr.mxu0 0.0
    %153 = vmatpush1.msra.mxu0 %v53
    %154 = vmatprep.subr.mxu0 0.0
    %155 = vmatpush1.msra.mxu0 %v52
    %156 = vmatprep.subr.mxu0 0.0
    %157 = vmatpush1.msra.mxu0 %v51
    %158 = vmatprep.subr.mxu0 0.0
    %159 = vmatpush1.msra.mxu0 %v50
    %160 = vmatprep.subr.mxu0 0.0
    %161 = vmatpush1.msra.mxu0 %v49
    %162 = vmatprep.subr.mxu0 0.0
    %163 = vmatpush1.msra.mxu0 %v48
    %164 = vmatprep.subr.mxu0 0.0
    %165 = vmatpush1.msra.mxu0 %v47
    %166 = vmatprep.subr.mxu0 0.0
    %167 = vmatpush1.msra.mxu0 %v46
    %168 = vmatprep.subr.mxu0 0.0
    %169 = vmatpush1.msra.mxu0 %v45
    %170 = vmatprep.subr.mxu0 0.0
    %171 = vmatpush1.msra.mxu0 %v44
    %172 = vmatprep.subr.mxu0 0.0
    %173 = vmatpush2.msra.mxu0 %v75
    %174 = vmatprep.subr.mxu0 0.0
    %175 = vmatpush2.msra.mxu0 %v74
    %176 = vmatprep.subr.mxu0 0.0
    %177 = vmatpush2.msra.mxu0 %v73
    %178 = vmatprep.subr.mxu0 0.0
    %179 = vmatpush2.msra.mxu0 %v72
    %180 = vmatprep.subr.mxu0 0.0
    %181 = vmatpush2.msra.mxu0 %v71
    %182 = vmatprep.subr.mxu0 0.0
    %183 = vmatpush2.msra.mxu0 %v70
    %184 = vmatprep.subr.mxu0 0.0
    %185 = vmatpush2.msra.mxu0 %v69
    %186 = vmatprep.subr.mxu0 0.0
    %187 = vmatpush2.msra.mxu0 %v68
    %188 = vmatprep.subr.mxu0 0.0
    %189 = vmatpush2.msra.mxu0 %v67
    %190 = vmatprep.subr.mxu0 0.0
    %191 = vmatpush2.msra.mxu0 %v66
    %192 = vmatprep.subr.mxu0 0.0
    %193 = vmatpush2.msra.mxu0 %v65
    %194 = vmatprep.subr.mxu0 0.0
    %195 = vmatpush2.msra.mxu0 %v64
    %196 = vmatprep.subr.mxu0 0.0
    %197 = vmatpush2.msra.mxu0 %v63
    %198 = vmatprep.subr.mxu0 0.0
    %199 = vmatpush2.msra.mxu0 %v62
    %200 = vmatprep.subr.mxu0 0.0
    %201 = vmatpush2.msra.mxu0 %v61
    %202 = vmatprep.subr.mxu0 0.0
    %203 = vmatpush2.msra.mxu0 %v60
    %204 = vmatprep.mubr.f32.mxu0 %v39
    %205 = vmatmul.mubr.f32.gmra.mxu0 %v38
    %v206 = vpop.f32.mrf.mxu0
    %v207 = vadd.f32 0.0, %v206
    %v208 = vpop.f32.mrf.mxu0
    %209 = vdwg.mxu0
    %210 = vmatprep.subr.mxu0 0.0
    %211 = vmatpush1.msra.mxu0 %v91
    %212 = vmatprep.subr.mxu0 0.0
    %213 = vmatpush1.msra.mxu0 %v90
    %214 = vmatprep.subr.mxu0 0.0
    %215 = vmatpush1.msra.mxu0 %v89
    %216 = vmatprep.subr.mxu0 0.0
    %217 = vmatpush1.msra.mxu0 %v88
    %218 = vmatprep.subr.mxu0 0.0
    %219 = vmatpush1.msra.mxu0 %v87
    %220 = vmatprep.subr.mxu0 0.0
    %221 = vmatpush1.msra.mxu0 %v86
    %222 = vmatprep.subr.mxu0 0.0
    %223 = vmatpush1.msra.mxu0 %v85
    %224 = vmatprep.subr.mxu0 0.0
    %225 = vmatpush1.msra.mxu0 %v84
    %226 = vmatprep.subr.mxu0 0.0
    %227 = vmatpush1.msra.mxu0 %v83
    %228 = vmatprep.subr.mxu0 0.0
    %229 = vmatpush1.msra.mxu0 %v82
    %230 = vmatprep.subr.mxu0 0.0
    %231 = vmatpush1.msra.mxu0 %v81
    %232 = vmatprep.subr.mxu0 0.0
    %233 = vmatpush1.msra.mxu0 %v80
    %234 = vmatprep.subr.mxu0 0.0
    %235 = vmatpush1.msra.mxu0 %v79
    %236 = vmatprep.subr.mxu0 0.0
    %237 = vmatpush1.msra.mxu0 %v78
    %238 = vmatprep.subr.mxu0 0.0
    %239 = vmatpush1.msra.mxu0 %v77
    %240 = vmatprep.subr.mxu0 0.0
    %241 = vmatpush1.msra.mxu0 %v76
    %242 = vmatprep.subr.mxu0 0.0
    %243 = vmatpush2.msra.mxu0 %v107
    %244 = vmatprep.subr.mxu0 0.0
    %245 = vmatpush2.msra.mxu0 %v106
    %246 = vmatprep.subr.mxu0 0.0
    %247 = vmatpush2.msra.mxu0 %v105
    %248 = vmatprep.subr.mxu0 0.0
    %249 = vmatpush2.msra.mxu0 %v104
    %250 = vmatprep.subr.mxu0 0.0
    %251 = vmatpush2.msra.mxu0 %v103
    %252 = vmatprep.subr.mxu0 0.0
    %253 = vmatpush2.msra.mxu0 %v102
    %254 = vmatprep.subr.mxu0 0.0
    %255 = vmatpush2.msra.mxu0 %v101
    %256 = vmatprep.subr.mxu0 0.0
    %257 = vmatpush2.msra.mxu0 %v100
    %258 = vmatprep.subr.mxu0 0.0
    %259 = vmatpush2.msra.mxu0 %v99
    %260 = vmatprep.subr.mxu0 0.0
    %261 = vmatpush2.msra.mxu0 %v98
    %262 = vmatprep.subr.mxu0 0.0
    %263 = vmatpush2.msra.mxu0 %v97
    %264 = vmatprep.subr.mxu0 0.0
    %265 = vmatpush2.msra.mxu0 %v96
    %266 = vmatprep.subr.mxu0 0.0
    %267 = vmatpush2.msra.mxu0 %v95
    %268 = vmatprep.subr.mxu0 0.0
    %269 = vmatpush2.msra.mxu0 %v94
    %270 = vmatprep.subr.mxu0 0.0
    %271 = vmatpush2.msra.mxu0 %v93
    %272 = vmatprep.subr.mxu0 0.0
    %273 = vmatpush2.msra.mxu0 %v92
    %274 = vmatprep.mubr.f32.mxu0 %v41
    %275 = vmatmul.mubr.f32.gmra.mxu0 %v40
    %v276 = vpop.f32.mrf.mxu0
    %v277 = vadd.f32 %v207, %v276
    %v278 = vpop.f32.mrf.mxu0
    %279 = vdwg.mxu0
    %280 = vmatprep.subr.mxu0 0.0
    %281 = vmatpush1.msra.mxu0 %v123
    %282 = vmatprep.subr.mxu0 0.0
    %283 = vmatpush1.msra.mxu0 %v122
    %284 = vmatprep.subr.mxu0 0.0
    %285 = vmatpush1.msra.mxu0 %v121
    %286 = vmatprep.subr.mxu0 0.0
    %287 = vmatpush1.msra.mxu0 %v120
    %288 = vmatprep.subr.mxu0 0.0
    %289 = vmatpush1.msra.mxu0 %v119
    %290 = vmatprep.subr.mxu0 0.0
    %291 = vmatpush1.msra.mxu0 %v118
    %292 = vmatprep.subr.mxu0 0.0
    %293 = vmatpush1.msra.mxu0 %v117
    %294 = vmatprep.subr.mxu0 0.0
    %295 = vmatpush1.msra.mxu0 %v116
    %296 = vmatprep.subr.mxu0 0.0
    %297 = vmatpush1.msra.mxu0 %v115
    %298 = vmatprep.subr.mxu0 0.0
    %299 = vmatpush1.msra.mxu0 %v114
    %300 = vmatprep.subr.mxu0 0.0
    %301 = vmatpush1.msra.mxu0 %v113
    %302 = vmatprep.subr.mxu0 0.0
    %303 = vmatpush1.msra.mxu0 %v112
    %304 = vmatprep.subr.mxu0 0.0
    %305 = vmatpush1.msra.mxu0 %v111
    %306 = vmatprep.subr.mxu0 0.0
    %307 = vmatpush1.msra.mxu0 %v110
    %308 = vmatprep.subr.mxu0 0.0
    %309 = vmatpush1.msra.mxu0 %v109
    %310 = vmatprep.subr.mxu0 0.0
    %311 = vmatpush1.msra.mxu0 %v108
    %312 = vmatprep.subr.mxu0 0.0
    %313 = vmatpush2.msra.mxu0 %v139
    %314 = vmatprep.subr.mxu0 0.0
    %315 = vmatpush2.msra.mxu0 %v138
    %316 = vmatprep.subr.mxu0 0.0
    %317 = vmatpush2.msra.mxu0 %v137
    %318 = vmatprep.subr.mxu0 0.0
    %319 = vmatpush2.msra.mxu0 %v136
    %320 = vmatprep.subr.mxu0 0.0
    %321 = vmatpush2.msra.mxu0 %v135
    %322 = vmatprep.subr.mxu0 0.0
    %323 = vmatpush2.msra.mxu0 %v134
    %324 = vmatprep.subr.mxu0 0.0
    %325 = vmatpush2.msra.mxu0 %v133
    %326 = vmatprep.subr.mxu0 0.0
    %327 = vmatpush2.msra.mxu0 %v132
    %328 = vmatprep.subr.mxu0 0.0
    %329 = vmatpush2.msra.mxu0 %v131
    %330 = vmatprep.subr.mxu0 0.0
    %331 = vmatpush2.msra.mxu0 %v130
    %332 = vmatprep.subr.mxu0 0.0
    %333 = vmatpush2.msra.mxu0 %v129
    %334 = vmatprep.subr.mxu0 0.0
    %335 = vmatpush2.msra.mxu0 %v128
    %336 = vmatprep.subr.mxu0 0.0
    %337 = vmatpush2.msra.mxu0 %v127
    %338 = vmatprep.subr.mxu0 0.0
    %339 = vmatpush2.msra.mxu0 %v126
    %340 = vmatprep.subr.mxu0 0.0
    %341 = vmatpush2.msra.mxu0 %v125
    %342 = vmatprep.subr.mxu0 0.0
    %343 = vmatpush2.msra.mxu0 %v124
    %344 = vmatprep.mubr.f32.mxu0 %v43
    %345 = vmatmul.mubr.f32.gmra.mxu0 %v42
    %v346 = vpop.f32.mrf.mxu0
    %v347 = vadd.f32 %v277, %v346
    %v348 = vpop.f32.mrf.mxu0
    %349 = vdwg.mxu0
    %350 = vst [vmem:[#allocation7] sm:$0xff] %v347
    // Predicated region
    $region18: #{_query_matmul.1} parent=1 // pred_check
      _
    $region19: #{_query_matmul.1} parent=1 // pred_check_branch
      %352 = sbr.rel (0) target = $region21
    $region20: #{_query_matmul.1} parent=1 // pred_region
      %s354 = ssub.s32 128, 128
      %355 = vsyncadd [#allocation4], %s354
      %s357 = sshll.u32 [#allocation7], 4
      %s358 = int_to_ptr.vmem [resolvable:$true] %s357
      %360 = dma.vmem_to_hbm [thread:$0]  %s358, 128, %s2, [#allocation4]
    $region21: #{_query_matmul.1} parent=1 // pred_fallthru
      _
    // Predicated region
    $region22: #{_query_matmul.1} parent=1 // pred_check
      _
    $region23: #{_query_matmul.1} parent=1 // pred_check_branch
      %362 = sbr.rel (0) target = $region25
    $region24: #{_query_matmul.1} parent=1 // pred_region
      %363 = dma.done [#allocation4], 128
    $region25: #{_query_matmul.1} parent=1 // pred_fallthru
      _
    %364 = vsyncpa [#allocation3], 1
    %365 = vsyncpa [#allocation6], 1
    %366 = vsyncpa [#allocation4], 1

</llo_original>
